<compile_context>
chip_gen: v7x
topology: tpu7x:2x2x1
jax: 0.10.0
libtpu: 0.0.40
codegen_flags: <defaults>
</compile_context>

<pallas_src>
import jax
import jax.numpy as jnp
from jax.experimental import pallas as pl
from jax.experimental.pallas import tpu as pltpu

_LANE = 128
# Per-tensor block budget.  4 refs (2 in + 2 out) x 2 pipeline buffers x 1 MiB
# = 8 MiB of VMEM, comfortably inside the default scoped limit on every TPU
# generation (v5e 16 MiB, v6e 32 MiB, v7x 32 MiB).
_PER_BLOCK_BYTES = 1 << 20


def _copy_kernel(k_ref, v_ref, ok_ref, ov_ref):
    # Streamed copy of one lane-dense tile of keys and values.
    ok_ref[...] = k_ref[...]
    ov_ref[...] = v_ref[...]


def _lane_dense_view(x):
    """Reshape to a 2D, lane-dense (rows, 128) view when possible.

    Row-major contiguous reshape, so this is metadata-only (a bitcast) in XLA.
    Falls back to (batch*seq, hidden) if the element count is not a multiple
    of 128 (the full last dim then satisfies the tiling rule on its own).
    """
    n = x.size
    if n % _LANE == 0:
        return x.reshape(n // _LANE, _LANE)
    return x.reshape(-1, x.shape[-1])


def _row_tile(rows: int, row_bytes: int) -> int:
    """Largest row tile (multiple of 32, or the whole array) within budget."""
    if rows * row_bytes <= _PER_BLOCK_BYTES:
        return rows
    t = (_PER_BLOCK_BYTES // max(row_bytes, 1)) // 32 * 32
    return max(32, min(rows, t))


class BaseCompressor:
    """JAX/Pallas port of the PyTorch BaseCompressor (identity compressor)."""

    def __init__(self, hidden_size: int):
        self.hidden_size = hidden_size

    def __call__(self, keys, values, importance=None):
        return self.forward(keys, values, importance)

    def forward(self, keys, values, importance=None):
        """Identity pass-through — no kernel, no HBM traffic (matches PyTorch,
        which returns the same tensor objects without copying)."""
        assert keys.shape == values.shape, "keys/values must share a shape"
        assert keys.shape[-1] == self.hidden_size
        # `importance` accepted for API parity but unused (as in PyTorch).
        return keys, values

    def materialize(self, keys, values):
        """Optional explicit streamed copy of (keys, values) via Pallas.

        Only for callers that require freshly materialized output buffers.
        Lane-dense, seq-tiled, parallel grid — runs at the HBM roofline.
        """
        assert keys.shape == values.shape, "keys/values must share a shape"

        k2 = _lane_dense_view(keys)
        v2 = _lane_dense_view(values)
        rows, cols = k2.shape
        itemsize = max(jnp.dtype(k2.dtype).itemsize, jnp.dtype(v2.dtype).itemsize)
        ts = _row_tile(rows, cols * itemsize)
        grid = (pl.cdiv(rows, ts),)

        spec = pl.BlockSpec((ts, cols), lambda i: (i, 0))

        ok2, ov2 = pl.pallas_call(
            _copy_kernel,
            out_shape=(
                jax.ShapeDtypeStruct(k2.shape, k2.dtype),
                jax.ShapeDtypeStruct(v2.shape, v2.dtype),
            ),
            grid_spec=pltpu.PrefetchScalarGridSpec(
                num_scalar_prefetch=0,
                grid=grid,
                in_specs=[spec, spec],
                out_specs=[spec, spec],
            ),
            # Parallel copy tiles: shards across both TensorCores on v7x; no
            # effect (and no cost) on single-TC v5e/v6e.
            compiler_params=pltpu.CompilerParams(
                dimension_semantics=("parallel",)
            ),
        )(k2, v2)

        return ok2.reshape(keys.shape), ov2.reshape(values.shape)

    def get_compression_stats(self):
        return {"hidden_size": self.hidden_size}


if __name__ == "__main__":
    batch, seq, hidden = 2, 8, 32
    key = jax.random.PRNGKey(0)
    k_key, v_key, imp_key = jax.random.split(key, 3)

    keys = jax.random.normal(k_key, (batch, seq, hidden), dtype=jnp.float32)
    values = jax.random.normal(v_key, (batch, seq, hidden), dtype=jnp.float32)
    importance = jax.random.uniform(imp_key, (batch, seq), dtype=jnp.float32)

    compressor = BaseCompressor(hidden_size=hidden)

    # Hot path: zero-cost identity pass-through (the module's actual forward).
    fk, fv = compressor(keys, values, importance)
    assert fk.shape == keys.shape and fv.shape == values.shape
    assert bool(jnp.array_equal(fk, keys)) and bool(jnp.array_equal(fv, values))

    # Exercise the optimized Pallas streamed-copy path once and verify it.
    ck, cv = compressor.materialize(keys, values)
    ck, cv = jax.block_until_ready((ck, cv))

    assert ck.shape == keys.shape and cv.shape == values.shape
    assert ck.dtype == keys.dtype and cv.dtype == values.dtype
    assert bool(jnp.array_equal(ck, keys))
    assert bool(jnp.array_equal(cv, values))

    print("KERNEL_OK")
</pallas_src>

<mosaic_0001>
module attributes {stable_mosaic.version = 11 : i64} {
  func.func @_copy_kernel(%arg0: i32, %arg1: memref<4x128xf32, #tpu.memory_space<vmem>>, %arg2: memref<4x128xf32, #tpu.memory_space<vmem>>, %arg3: memref<4x128xf32, #tpu.memory_space<vmem>>, %arg4: memref<4x128xf32, #tpu.memory_space<vmem>>) attributes {dimension_semantics = [#tpu.dimension_semantics<parallel>], iteration_bounds = array<i64: 1>, scalar_prefetch = 0 : i64, scratch_operands = 0 : i64, tpu.core_type = #tpu.core_type<tc>, window_params = [{transform_indices = @transform_0, window_bounds = array<i64: 4, 128>}, {transform_indices = @transform_1, window_bounds = array<i64: 4, 128>}, {transform_indices = @transform_2, window_bounds = array<i64: 4, 128>}, {transform_indices = @transform_3, window_bounds = array<i64: 4, 128>}]} {
    %c0 = arith.constant 0 : index
    %c0_0 = arith.constant 0 : index
    %0 = vector.load %arg1[%c0, %c0_0] : memref<4x128xf32, #tpu.memory_space<vmem>>, vector<4x128xf32>
    %c0_1 = arith.constant 0 : index
    %c0_2 = arith.constant 0 : index
    %1 = vector.load %arg3[%c0_1, %c0_2] : memref<4x128xf32, #tpu.memory_space<vmem>>, vector<4x128xf32>
    tpu.vector_store %arg3[%c0_1, %c0_2], %0 {strides = array<i32>} : memref<4x128xf32, #tpu.memory_space<vmem>>, vector<4x128xf32>,
    %c0_3 = arith.constant 0 : index
    %c0_4 = arith.constant 0 : index
    %2 = vector.load %arg2[%c0_3, %c0_4] : memref<4x128xf32, #tpu.memory_space<vmem>>, vector<4x128xf32>
    %c0_5 = arith.constant 0 : index
    %c0_6 = arith.constant 0 : index
    %3 = vector.load %arg4[%c0_5, %c0_6] : memref<4x128xf32, #tpu.memory_space<vmem>>, vector<4x128xf32>
    tpu.vector_store %arg4[%c0_5, %c0_6], %2 {strides = array<i32>} : memref<4x128xf32, #tpu.memory_space<vmem>>, vector<4x128xf32>,
    return
  }
  func.func @transform_0(%arg0: i32) -> (i32, i32) {
    %c0_i32 = arith.constant 0 : i32
    %c0_i32_0 = arith.constant 0 : i32
    return %arg0, %c0_i32 : i32, i32
  }
  func.func @transform_1(%arg0: i32) -> (i32, i32) {
    %c0_i32 = arith.constant 0 : i32
    %c0_i32_0 = arith.constant 0 : i32
    return %arg0, %c0_i32 : i32, i32
  }
  func.func @transform_2(%arg0: i32) -> (i32, i32) {
    %c0_i32 = arith.constant 0 : i32
    %c0_i32_0 = arith.constant 0 : i32
    return %arg0, %c0_i32 : i32, i32
  }
  func.func @transform_3(%arg0: i32) -> (i32, i32) {
    %c0_i32 = arith.constant 0 : i32
    %c0_i32_0 = arith.constant 0 : i32
    return %arg0, %c0_i32 : i32, i32
  }
}

</mosaic_0001>

<llo_original>
// kernel: tpu_custom_call.1
$region0: #{tpu_custom_call.1}
  #allocation0 [shape = 'u32[]', space=smem, size = 0x4, offset = 0x4, fixed_abs, tag = 'smem constant byte address 0x4 - core index']
  #allocation1 [shape = 'u32[144,128]{1,0:T(1,128)}', space=vmem, size = 0x12000, scoped, tag = 'internal scratch']
  %s0 = inlined_call_operand.hbm [shape: f32[4,128], index: 0, kind: input, shape index: {}]
  %s1 = inlined_call_operand.hbm [shape: f32[4,128], index: 1, kind: input, shape index: {}]
  %s2 = inlined_call_operand.hbm [shape: f32[4,128], index: 2, kind: output, shape index: {0}]
  %s3 = inlined_call_operand.hbm [shape: f32[4,128], index: 3, kind: output, shape index: {1}]
  %4 = xla_tuple %s2, %s3
  %s5 = sld [smem:[#allocation0]]
  $region34: #{tpu_custom_call.1} parent=0
    _
  %s7 = ssub.s32 1, %s5
  %s8 = scalar_select 0, %s7, %s5
  $region1: #{tpu_custom_call.1} parent=0
    #allocation2 [shape = 'u8[2048]{0}', space=vmem, size = 0x800, scoped, tag = 'input window, operand 0, single buffered']
    #allocation3 [shape = 's32[1]{0}', space=sflag, size = 0x4, scoped, tag = 'scoped memory for tpu_custom_call.1']
    #allocation4 [shape = 's32[1]{0}', space=sflag, size = 0x4, scoped, tag = 'scoped memory for tpu_custom_call.1']
    #allocation5 [shape = 'u8[2048]{0}', space=vmem, size = 0x800, scoped, tag = 'input window, operand 1, single buffered']
    #allocation6 [shape = 's32[1]{0}', space=sflag, size = 0x4, scoped, tag = 'scoped memory for tpu_custom_call.1']
    #allocation7 [shape = 'u8[2048]{0}', space=vmem, size = 0x800, scoped, tag = 'output window, operand 0, single buffered']
    #allocation8 [shape = 'u8[2048]{0}', space=vmem, size = 0x800, scoped, tag = 'output window, operand 1, single buffered']
    #allocation9 [shape = 's32[1]{0}', space=sflag, size = 0x4, scoped, tag = 'scoped memory for tpu_custom_call.1']
    %9 = vsyncpa [#allocation3], 0
    %10 = vsyncpa [#allocation6], 0
    %11 = vsyncpa [#allocation4], 0
    %12 = vsyncpa [#allocation9], 0
    // Predicated region
    $region2: #{tpu_custom_call.1} parent=1 // pred_check
      _
    $region3: #{tpu_custom_call.1} parent=1 // pred_check_branch
      %14 = sbr.rel (0) target = $region5
    $region4: #{tpu_custom_call.1} parent=1 // pred_region
      %s16 = ssub.s32 64, 64
      %17 = vsyncadd [#allocation3], %s16
      %s19 = sshll.u32 [#allocation2], 4
      %s20 = int_to_ptr.vmem [resolvable:$true] %s19
      %22 = dma.hbm_to_vmem [thread:$0]  %s0, 64, %s20, [#allocation3]
    $region5: #{tpu_custom_call.1} parent=1 // pred_fallthru
      _
    // Predicated region
    $region6: #{tpu_custom_call.1} parent=1 // pred_check
      _
    $region7: #{tpu_custom_call.1} parent=1 // pred_check_branch
      %24 = sbr.rel (0) target = $region9
    $region8: #{tpu_custom_call.1} parent=1 // pred_region
      %s26 = ssub.s32 64, 64
      %27 = vsyncadd [#allocation6], %s26
      %s29 = sshll.u32 [#allocation5], 4
      %s30 = int_to_ptr.vmem [resolvable:$true] %s29
      %32 = dma.hbm_to_vmem [thread:$0]  %s1, 64, %s30, [#allocation6]
    $region9: #{tpu_custom_call.1} parent=1 // pred_fallthru
      _
    // Predicated region
    $region10: #{tpu_custom_call.1} parent=1 // pred_check
      _
    $region11: #{tpu_custom_call.1} parent=1 // pred_check_branch
      %34 = sbr.rel (0) target = $region13
    $region12: #{tpu_custom_call.1} parent=1 // pred_region
      %35 = dma.done [#allocation3], 64
    $region13: #{tpu_custom_call.1} parent=1 // pred_fallthru
      _
    // Predicated region
    $region14: #{tpu_custom_call.1} parent=1 // pred_check
      _
    $region15: #{tpu_custom_call.1} parent=1 // pred_check_branch
      %37 = sbr.rel (0) target = $region17
    $region16: #{tpu_custom_call.1} parent=1 // pred_region
      %38 = dma.done [#allocation6], 64
    $region17: #{tpu_custom_call.1} parent=1 // pred_fallthru
      _
    %v39 = vld [vmem:[#allocation2] sm:$0xf]
    %40 = vst [vmem:[#allocation7] sm:$0xf] %v39
    %v41 = vld [vmem:[#allocation5] sm:$0xf]
    %42 = vst [vmem:[#allocation8] sm:$0xf] %v41
    // Predicated region
    $region18: #{tpu_custom_call.1} parent=1 // pred_check
      _
    $region19: #{tpu_custom_call.1} parent=1 // pred_check_branch
      %44 = sbr.rel (0) target = $region21
    $region20: #{tpu_custom_call.1} parent=1 // pred_region
      %s46 = ssub.s32 64, 64
      %47 = vsyncadd [#allocation4], %s46
      %s49 = sshll.u32 [#allocation7], 4
      %s50 = int_to_ptr.vmem [resolvable:$true] %s49
      %52 = dma.vmem_to_hbm [thread:$0]  %s50, 64, %s2, [#allocation4]
    $region21: #{tpu_custom_call.1} parent=1 // pred_fallthru
      _
    // Predicated region
    $region22: #{tpu_custom_call.1} parent=1 // pred_check
      _
    $region23: #{tpu_custom_call.1} parent=1 // pred_check_branch
      %54 = sbr.rel (0) target = $region25
    $region24: #{tpu_custom_call.1} parent=1 // pred_region
      %s56 = ssub.s32 64, 64
      %57 = vsyncadd [#allocation9], %s56
      %s59 = sshll.u32 [#allocation8], 4
      %s60 = int_to_ptr.vmem [resolvable:$true] %s59
      %62 = dma.vmem_to_hbm [thread:$0]  %s60, 64, %s3, [#allocation9]
    $region25: #{tpu_custom_call.1} parent=1 // pred_fallthru
      _
    // Predicated region
    $region26: #{tpu_custom_call.1} parent=1 // pred_check
      _
    $region27: #{tpu_custom_call.1} parent=1 // pred_check_branch
      %64 = sbr.rel (0) target = $region29
    $region28: #{tpu_custom_call.1} parent=1 // pred_region
      %65 = dma.done [#allocation4], 64
    $region29: #{tpu_custom_call.1} parent=1 // pred_fallthru
      _
    // Predicated region
    $region30: #{tpu_custom_call.1} parent=1 // pred_check
      _
    $region31: #{tpu_custom_call.1} parent=1 // pred_check_branch
      %67 = sbr.rel (0) target = $region33
    $region32: #{tpu_custom_call.1} parent=1 // pred_region
      %68 = dma.done [#allocation9], 64
    $region33: #{tpu_custom_call.1} parent=1 // pred_fallthru
      _
    %69 = vsyncpa [#allocation3], 1
    %70 = vsyncpa [#allocation6], 1
    %71 = vsyncpa [#allocation4], 1
    %72 = vsyncpa [#allocation9], 1

</llo_original>
